<compile_context>
chip_gen: v6e
topology: v6e:2x2x1
jax: 0.10.0
libtpu: 0.0.40
codegen_flags: <defaults>
</compile_context>

<pallas_src>
import jax
import jax.numpy as jnp
from jax.experimental import pallas as pl
from jax.experimental.pallas import tpu as pltpu


# ----------------------------------------------------------------------------
# Kernel: one grid step == one RNN timestep. Weights resident, h carried in VMEM.
# ----------------------------------------------------------------------------
def rnn_agent_seq_kernel(inp_ref, h0_ref,
                         w1_ref, wrz_ref, win_ref, whn_ref, w2a_ref, bias_ref,
                         q_ref, hout_ref,
                         h_carry):
    t = pl.program_id(0)
    T = pl.num_programs(0)
    H = h0_ref.shape[-1]

    # packed bias row: [ b1 (H) | b_rz (2H) | b_in (H) | b_hn (H) | b2a (A_pad) ]
    b1 = bias_ref[:, 0:H]
    b_rz = bias_ref[:, H:3 * H]
    b_in = bias_ref[:, 3 * H:4 * H]
    b_hn = bias_ref[:, 4 * H:5 * H]
    b2a = bias_ref[:, 5 * H:]

    @pl.when(t == 0)
    def _():
        h_carry[...] = h0_ref[...]

    h_prev = h_carry[...]                     # f32 [B, H]
    x_in = inp_ref[0]                         # f32 [B, IN]

    # fc1 + ReLU (bf16 matmul operands, f32 accumulate, f32 elementwise)
    x = jnp.dot(x_in.astype(jnp.bfloat16), w1_ref[...],
                preferred_element_type=jnp.float32)
    x = jnp.maximum(x + b1, 0.0)

    # GRU r/z gates: one fused K=2H matmul on [x | h]
    xh = jnp.concatenate([x, h_prev], axis=-1).astype(jnp.bfloat16)   # [B, 2H]
    rz = jax.nn.sigmoid(
        jnp.dot(xh, wrz_ref[...], preferred_element_type=jnp.float32) + b_rz)
    r = rz[:, 0:H]
    z = rz[:, H:2 * H]

    # n gate: gh_n must stay separate because of r * (W_hn h + b_hn)
    x_bf = x.astype(jnp.bfloat16)
    h_bf = h_prev.astype(jnp.bfloat16)
    gi_n = jnp.dot(x_bf, win_ref[...], preferred_element_type=jnp.float32) + b_in
    gh_n = jnp.dot(h_bf, whn_ref[...], preferred_element_type=jnp.float32) + b_hn
    n = jnp.tanh(gi_n + r * gh_n)

    h_new = (1.0 - z) * n + z * h_prev

    # q = h_new @ (fc2_w^T @ action_repr^T) + fc2_b @ action_repr^T  (pre-fused)
    q = jnp.dot(h_new.astype(jnp.bfloat16), w2a_ref[...],
                preferred_element_type=jnp.float32) + b2a

    h_carry[...] = h_new
    q_ref[0] = q

    @pl.when(t == T - 1)
    def _():
        hout_ref[...] = h_new


# ----------------------------------------------------------------------------
# One-time parameter preparation (transposes, GRU r/z stacking, fc2*action_repr
# fusion, bf16 casts, bias packing). Do NOT call per forward step.
# ----------------------------------------------------------------------------
def prepare_params(params, action_repr, lane=128):
    H = params["fc1_w"].shape[0]
    A = action_repr.shape[0]
    A_pad = max(lane, ((A + lane - 1) // lane) * lane)

    w_ih = params["gru_w_ih"]      # [3H, H]
    w_hh = params["gru_w_hh"]      # [3H, H]
    b_ih = params["gru_b_ih"]      # [3H]
    b_hh = params["gru_b_hh"]      # [3H]

    w1 = params["fc1_w"].T.astype(jnp.bfloat16)                           # [IN, H]
    w_rz = jnp.concatenate([w_ih[:2 * H].T, w_hh[:2 * H].T],
                           axis=0).astype(jnp.bfloat16)                   # [2H, 2H]
    w_in = w_ih[2 * H:].T.astype(jnp.bfloat16)                            # [H, H]
    w_hn = w_hh[2 * H:].T.astype(jnp.bfloat16)                            # [H, H]

    # fc2 fused with action_repr (f32 fuse, then bf16 cast)
    w2a = params["fc2_w"].T @ action_repr.T                               # [H, A]
    b2a = params["fc2_b"] @ action_repr.T                                 # [A]
    w2a = jnp.pad(w2a, ((0, 0), (0, A_pad - A))).astype(jnp.bfloat16)     # [H, A_pad]
    b2a = jnp.pad(b2a, (0, A_pad - A))                                    # [A_pad]

    bias = jnp.concatenate([
        params["fc1_b"],                       # H
        b_ih[:2 * H] + b_hh[:2 * H],           # 2H  (r,z biases pre-summed)
        b_ih[2 * H:],                          # H   (b_in)
        b_hh[2 * H:],                          # H   (b_hn, multiplied by r)
        b2a,                                   # A_pad
    ]).reshape(1, -1).astype(jnp.float32)

    return dict(w1=w1, w_rz=w_rz, w_in=w_in, w_hn=w_hn, w2a=w2a, bias=bias,
                hidden_dim=H, n_actions=A, n_actions_padded=A_pad)


# ----------------------------------------------------------------------------
# Sequence forward: inputs_seq [T, B, IN], hidden_state [..., H] -> (q [T,B,A], h [B,H])
# ----------------------------------------------------------------------------
def rnn_agent_forward_seq(inputs_seq, hidden_state, prep):
    T, B, IN = inputs_seq.shape
    H = prep["hidden_dim"]
    A = prep["n_actions"]
    A_pad = prep["n_actions_padded"]

    h0 = hidden_state.reshape(-1, H).astype(jnp.float32)
    const2 = lambda t: (0, 0)

    grid_spec = pltpu.PrefetchScalarGridSpec(
        num_scalar_prefetch=0,
        grid=(T,),
        in_specs=[
            pl.BlockSpec((1, B, IN), lambda t: (t, 0, 0)),      # inputs[t]
            pl.BlockSpec((B, H), const2),                       # h0 (read at t==0)
            pl.BlockSpec(prep["w1"].shape, const2),             # resident weights
            pl.BlockSpec(prep["w_rz"].shape, const2),
            pl.BlockSpec(prep["w_in"].shape, const2),
            pl.BlockSpec(prep["w_hn"].shape, const2),
            pl.BlockSpec(prep["w2a"].shape, const2),
            pl.BlockSpec(prep["bias"].shape, const2),
        ],
        out_specs=(
            pl.BlockSpec((1, B, A_pad), lambda t: (t, 0, 0)),   # q[t] (lane-dense)
            pl.BlockSpec((B, H), const2),                       # final hidden
        ),
        scratch_shapes=[pltpu.VMEM((B, H), jnp.float32)],       # hidden carry
    )

    q_pad, h_out = pl.pallas_call(
        rnn_agent_seq_kernel,
        grid_spec=grid_spec,
        out_shape=(
            jax.ShapeDtypeStruct((T, B, A_pad), jnp.float32),
            jax.ShapeDtypeStruct((B, H), jnp.float32),
        ),
        compiler_params=pltpu.CompilerParams(
            dimension_semantics=("arbitrary",)),                # sequential carry over T
        input_output_aliases={1: 1},                            # h0 buffer reused for h_out
    )(inputs_seq.astype(jnp.float32), h0,
      prep["w1"], prep["w_rz"], prep["w_in"], prep["w_hn"], prep["w2a"],
      prep["bias"])

    return q_pad[..., :A], h_out


def rnn_agent_forward(inputs, hidden_state, prep):
    """Single-step forward matching the PyTorch module interface (T=1)."""
    q, h = rnn_agent_forward_seq(inputs[None], hidden_state, prep)
    return q[0], h


# ----------------------------------------------------------------------------
# Parameter init + pure-JAX f32 reference (original math, no fusion / bf16)
# ----------------------------------------------------------------------------
def make_params(key, input_shape, hidden_dim, action_latent_dim):
    ks = jax.random.split(key, 8)
    s = 0.05
    return {
        "fc1_w": s * jax.random.normal(ks[0], (hidden_dim, input_shape), jnp.float32),
        "fc1_b": s * jax.random.normal(ks[1], (hidden_dim,), jnp.float32),
        "gru_w_ih": s * jax.random.normal(ks[2], (3 * hidden_dim, hidden_dim), jnp.float32),
        "gru_b_ih": s * jax.random.normal(ks[3], (3 * hidden_dim,), jnp.float32),
        "gru_w_hh": s * jax.random.normal(ks[4], (3 * hidden_dim, hidden_dim), jnp.float32),
        "gru_b_hh": s * jax.random.normal(ks[5], (3 * hidden_dim,), jnp.float32),
        "fc2_w": s * jax.random.normal(ks[6], (action_latent_dim, hidden_dim), jnp.float32),
        "fc2_b": s * jax.random.normal(ks[7], (action_latent_dim,), jnp.float32),
    }


def reference_forward_step(inputs, hidden_state, action_repr, params):
    H = params["fc1_w"].shape[0]
    x = jax.nn.relu(inputs @ params["fc1_w"].T + params["fc1_b"])
    h_in = hidden_state.reshape(-1, H)
    gi = x @ params["gru_w_ih"].T + params["gru_b_ih"]
    gh = h_in @ params["gru_w_hh"].T + params["gru_b_hh"]
    r = jax.nn.sigmoid(gi[:, 0:H] + gh[:, 0:H])
    z = jax.nn.sigmoid(gi[:, H:2 * H] + gh[:, H:2 * H])
    n = jnp.tanh(gi[:, 2 * H:] + r * gh[:, 2 * H:])
    h = (1.0 - z) * n + z * h_in
    key = h @ params["fc2_w"].T + params["fc2_b"]
    q = key @ action_repr.T
    return q, h


if __name__ == "__main__":
    T = 8                 # sequence length (timesteps processed per kernel call)
    B = 8                 # batch (n_agents * batch)
    INPUT_SHAPE = 64      # obs dim
    HIDDEN = 128          # args.hidden_dim
    LATENT = 32           # args.action_latent_dim
    N_ACTIONS = 16        # args.n_actions

    root = jax.random.PRNGKey(0)
    k_in, k_h, k_ar, k_p = jax.random.split(root, 4)

    inputs_seq = jax.random.normal(k_in, (T, B, INPUT_SHAPE), jnp.float32)
    hidden0 = jax.random.normal(k_h, (B, HIDDEN), jnp.float32)
    action_repr = jax.random.normal(k_ar, (N_ACTIONS, LATENT), jnp.float32)
    params = make_params(k_p, INPUT_SHAPE, HIDDEN, LATENT)

    prep = prepare_params(params, action_repr)   # once, not per call

    # full-sequence kernel
    q_seq, h_final = rnn_agent_forward_seq(inputs_seq, hidden0, prep)
    jax.block_until_ready((q_seq, h_final))

    # reference rollout (f32, unfused)
    h_ref = hidden0
    q_refs = []
    for t in range(T):
        q_t, h_ref = reference_forward_step(inputs_seq[t], h_ref, action_repr, params)
        q_refs.append(q_t)
    q_ref = jnp.stack(q_refs, axis=0)

    assert q_seq.shape == (T, B, N_ACTIONS) and h_final.shape == (B, HIDDEN)
    # bf16 matmul operands (f32 accumulate) -> slightly looser tolerance
    assert jnp.allclose(q_seq, q_ref, atol=5e-2, rtol=5e-2), \
        float(jnp.max(jnp.abs(q_seq - q_ref)))
    assert jnp.allclose(h_final, h_ref, atol=5e-2, rtol=5e-2), \
        float(jnp.max(jnp.abs(h_final - h_ref)))

    # single-step interface parity with the PyTorch module forward
    q1, h1 = rnn_agent_forward(inputs_seq[0], hidden0, prep)
    q1_ref, h1_ref = reference_forward_step(inputs_seq[0], hidden0, action_repr, params)
    assert jnp.allclose(q1, q1_ref, atol=5e-2, rtol=5e-2)
    assert jnp.allclose(h1, h1_ref, atol=5e-2, rtol=5e-2)

    print("KERNEL_OK")
</pallas_src>

<mosaic_0001>
module attributes {stable_mosaic.version = 11 : i64} {
  func.func @rnn_agent_seq_kernel(%arg0: i32, %arg1: memref<1x8x64xf32, #tpu.memory_space<vmem>>, %arg2: memref<8x128xf32, #tpu.memory_space<vmem>>, %arg3: memref<64x128xbf16, #tpu.memory_space<vmem>>, %arg4: memref<256x256xbf16, #tpu.memory_space<vmem>>, %arg5: memref<128x128xbf16, #tpu.memory_space<vmem>>, %arg6: memref<128x128xbf16, #tpu.memory_space<vmem>>, %arg7: memref<128x128xbf16, #tpu.memory_space<vmem>>, %arg8: memref<1x768xf32, #tpu.memory_space<vmem>>, %arg9: memref<1x8x128xf32, #tpu.memory_space<vmem>>, %arg10: memref<8x128xf32, #tpu.memory_space<vmem>>, %arg11: memref<8x128xf32, #tpu.memory_space<vmem>>) attributes {dimension_semantics = [#tpu.dimension_semantics<arbitrary>], iteration_bounds = array<i64: 8>, scalar_prefetch = 0 : i64, scratch_operands = 1 : i64, tpu.core_type = #tpu.core_type<tc>, window_params = [{transform_indices = @transform_0, window_bounds = array<i64: 1, 8, 64>}, {pipeline_mode = #tpu.pipeline_mode<synchronous>, transform_indices = @transform_1, window_bounds = array<i64: 8, 128>}, {pipeline_mode = #tpu.pipeline_mode<synchronous>, transform_indices = @transform_2, window_bounds = array<i64: 64, 128>}, {pipeline_mode = #tpu.pipeline_mode<synchronous>, transform_indices = @transform_3, window_bounds = array<i64: 256, 256>}, {pipeline_mode = #tpu.pipeline_mode<synchronous>, transform_indices = @transform_4, window_bounds = array<i64: 128, 128>}, {pipeline_mode = #tpu.pipeline_mode<synchronous>, transform_indices = @transform_5, window_bounds = array<i64: 128, 128>}, {pipeline_mode = #tpu.pipeline_mode<synchronous>, transform_indices = @transform_6, window_bounds = array<i64: 128, 128>}, {pipeline_mode = #tpu.pipeline_mode<synchronous>, transform_indices = @transform_7, window_bounds = array<i64: 1, 768>}, {transform_indices = @transform_8, window_bounds = array<i64: 1, 8, 128>}, {pipeline_mode = #tpu.pipeline_mode<synchronous>, transform_indices = @transform_9, window_bounds = array<i64: 8, 128>}]} {
    %c0 = arith.constant 0 : index
    %c0_0 = arith.constant 0 : index
    %0 = vector.load %arg8[%c0, %c0_0] : memref<1x768xf32, #tpu.memory_space<vmem>>, vector<1x128xf32>
    %c0_1 = arith.constant 0 : index
    %c128 = arith.constant 128 : index
    %1 = vector.load %arg8[%c0_1, %c128] : memref<1x768xf32, #tpu.memory_space<vmem>>, vector<1x256xf32>
    %c0_2 = arith.constant 0 : index
    %c384 = arith.constant 384 : index
    %2 = vector.load %arg8[%c0_2, %c384] : memref<1x768xf32, #tpu.memory_space<vmem>>, vector<1x128xf32>
    %c0_3 = arith.constant 0 : index
    %c512 = arith.constant 512 : index
    %3 = vector.load %arg8[%c0_3, %c512] : memref<1x768xf32, #tpu.memory_space<vmem>>, vector<1x128xf32>
    %c0_4 = arith.constant 0 : index
    %c640 = arith.constant 640 : index
    %4 = vector.load %arg8[%c0_4, %c640] : memref<1x768xf32, #tpu.memory_space<vmem>>, vector<1x128xf32>
    %c0_i32 = arith.constant 0 : i32
    %5 = arith.cmpi eq, %arg0, %c0_i32 : i32
    %6 = arith.extui %5 : i1 to i32
    %c0_i32_5 = arith.constant 0 : i32
    %7 = arith.cmpi ne, %6, %c0_i32_5 : i32
    scf.if %7 {
      %c0_34 = arith.constant 0 : index
      %c0_35 = arith.constant 0 : index
      %61 = vector.load %arg2[%c0_34, %c0_35] : memref<8x128xf32, #tpu.memory_space<vmem>>, vector<8x128xf32>
      %c0_36 = arith.constant 0 : index
      %c0_37 = arith.constant 0 : index
      %62 = vector.load %arg11[%c0_36, %c0_37] : memref<8x128xf32, #tpu.memory_space<vmem>>, vector<8x128xf32>
      tpu.vector_store %arg11[%c0_36, %c0_37], %61 {strides = array<i32>} : memref<8x128xf32, #tpu.memory_space<vmem>>, vector<8x128xf32>,
    } else {
    }
    %c0_6 = arith.constant 0 : index
    %c0_7 = arith.constant 0 : index
    %8 = vector.load %arg11[%c0_6, %c0_7] : memref<8x128xf32, #tpu.memory_space<vmem>>, vector<8x128xf32>
    %c0_8 = arith.constant 0 : index
    %c0_9 = arith.constant 0 : index
    %c0_10 = arith.constant 0 : index
    %9 = vector.load %arg1[%c0_8, %c0_9, %c0_10] : memref<1x8x64xf32, #tpu.memory_space<vmem>>, vector<1x8x64xf32>
    %10 = vector.shape_cast %9 : vector<1x8x64xf32> to vector<8x64xf32>
    %11 = arith.truncf %10 : vector<8x64xf32> to vector<8x64xbf16>
    %c0_11 = arith.constant 0 : index
    %c0_12 = arith.constant 0 : index
    %12 = vector.load %arg3[%c0_11, %c0_12] : memref<64x128xbf16, #tpu.memory_space<vmem>>, vector<64x128xbf16>
    %cst = arith.constant dense<0.000000e+00> : vector<8x128xf32>
    %13 = tpu.matmul %11, %12, %cst {dimension_numbers = #tpu.dot_dimension_numbers<[1], [0], [0], [1], [0, 0, 1, 1], [], []>} : vector<8x64xbf16>, vector<64x128xbf16>, vector<8x128xf32> -> vector<8x128xf32>
    %14 = vector.broadcast %0 : vector<1x128xf32> to vector<8x128xf32>
    %15 = arith.addf %13, %14 : vector<8x128xf32>
    %cst_13 = arith.constant 0.000000e+00 : f32
    %16 = vector.broadcast %cst_13 : f32 to vector<8x128xf32>
    %17 = arith.maximumf %15, %16 : vector<8x128xf32>
    %18 = tpu.concatenate %17, %8 in 1 : vector<8x128xf32>, vector<8x128xf32> -> vector<8x256xf32>
    %19 = arith.truncf %18 : vector<8x256xf32> to vector<8x256xbf16>
    %c0_14 = arith.constant 0 : index
    %c0_15 = arith.constant 0 : index
    %20 = vector.load %arg4[%c0_14, %c0_15] : memref<256x256xbf16, #tpu.memory_space<vmem>>, vector<256x256xbf16>
    %cst_16 = arith.constant dense<0.000000e+00> : vector<8x256xf32>
    %21 = tpu.matmul %19, %20, %cst_16 {dimension_numbers = #tpu.dot_dimension_numbers<[1], [0], [0], [1], [0, 0, 1, 1], [], []>} : vector<8x256xbf16>, vector<256x256xbf16>, vector<8x256xf32> -> vector<8x256xf32>
    %22 = vector.broadcast %1 : vector<1x256xf32> to vector<8x256xf32>
    %23 = arith.addf %21, %22 : vector<8x256xf32>
    %24 = arith.negf %23 : vector<8x256xf32>
    %25 = math.exp %24 : vector<8x256xf32>
    %cst_17 = arith.constant 1.000000e+00 : f32
    %26 = vector.broadcast %cst_17 : f32 to vector<8x256xf32>
    %27 = arith.addf %26, %25 : vector<8x256xf32>
    %28 = arith.divf %26, %27 : vector<8x256xf32>
    %29 = vector.extract_strided_slice %28 {offsets = [0, 0], sizes = [8, 128], strides = [1, 1]} : vector<8x256xf32> to vector<8x128xf32>
    %30 = vector.extract_strided_slice %28 {offsets = [0, 128], sizes = [8, 128], strides = [1, 1]} : vector<8x256xf32> to vector<8x128xf32>
    %31 = arith.truncf %17 : vector<8x128xf32> to vector<8x128xbf16>
    %32 = arith.truncf %8 : vector<8x128xf32> to vector<8x128xbf16>
    %c0_18 = arith.constant 0 : index
    %c0_19 = arith.constant 0 : index
    %33 = vector.load %arg5[%c0_18, %c0_19] : memref<128x128xbf16, #tpu.memory_space<vmem>>, vector<128x128xbf16>
    %cst_20 = arith.constant dense<0.000000e+00> : vector<8x128xf32>
    %34 = tpu.matmul %31, %33, %cst_20 {dimension_numbers = #tpu.dot_dimension_numbers<[1], [0], [0], [1], [0, 0, 1, 1], [], []>} : vector<8x128xbf16>, vector<128x128xbf16>, vector<8x128xf32> -> vector<8x128xf32>
    %35 = vector.broadcast %2 : vector<1x128xf32> to vector<8x128xf32>
    %36 = arith.addf %34, %35 : vector<8x128xf32>
    %c0_21 = arith.constant 0 : index
    %c0_22 = arith.constant 0 : index
    %37 = vector.load %arg6[%c0_21, %c0_22] : memref<128x128xbf16, #tpu.memory_space<vmem>>, vector<128x128xbf16>
    %cst_23 = arith.constant dense<0.000000e+00> : vector<8x128xf32>
    %38 = tpu.matmul %32, %37, %cst_23 {dimension_numbers = #tpu.dot_dimension_numbers<[1], [0], [0], [1], [0, 0, 1, 1], [], []>} : vector<8x128xbf16>, vector<128x128xbf16>, vector<8x128xf32> -> vector<8x128xf32>
    %39 = vector.broadcast %3 : vector<1x128xf32> to vector<8x128xf32>
    %40 = arith.addf %38, %39 : vector<8x128xf32>
    %41 = arith.mulf %29, %40 : vector<8x128xf32>
    %42 = arith.addf %36, %41 : vector<8x128xf32>
    %43 = math.tanh %42 : vector<8x128xf32>
    %cst_24 = arith.constant 1.000000e+00 : f32
    %44 = vector.broadcast %cst_24 : f32 to vector<8x128xf32>
    %45 = arith.subf %44, %30 : vector<8x128xf32>
    %46 = arith.mulf %45, %43 : vector<8x128xf32>
    %47 = arith.mulf %30, %8 : vector<8x128xf32>
    %48 = arith.addf %46, %47 : vector<8x128xf32>
    %49 = arith.truncf %48 : vector<8x128xf32> to vector<8x128xbf16>
    %c0_25 = arith.constant 0 : index
    %c0_26 = arith.constant 0 : index
    %50 = vector.load %arg7[%c0_25, %c0_26] : memref<128x128xbf16, #tpu.memory_space<vmem>>, vector<128x128xbf16>
    %cst_27 = arith.constant dense<0.000000e+00> : vector<8x128xf32>
    %51 = tpu.matmul %49, %50, %cst_27 {dimension_numbers = #tpu.dot_dimension_numbers<[1], [0], [0], [1], [0, 0, 1, 1], [], []>} : vector<8x128xbf16>, vector<128x128xbf16>, vector<8x128xf32> -> vector<8x128xf32>
    %52 = vector.broadcast %4 : vector<1x128xf32> to vector<8x128xf32>
    %53 = arith.addf %51, %52 : vector<8x128xf32>
    %c0_28 = arith.constant 0 : index
    %c0_29 = arith.constant 0 : index
    %54 = vector.load %arg11[%c0_28, %c0_29] : memref<8x128xf32, #tpu.memory_space<vmem>>, vector<8x128xf32>
    tpu.vector_store %arg11[%c0_28, %c0_29], %48 {strides = array<i32>} : memref<8x128xf32, #tpu.memory_space<vmem>>, vector<8x128xf32>,
    %c0_30 = arith.constant 0 : index
    %c0_31 = arith.constant 0 : index
    %c0_32 = arith.constant 0 : index
    %55 = vector.load %arg9[%c0_30, %c0_31, %c0_32] : memref<1x8x128xf32, #tpu.memory_space<vmem>>, vector<1x8x128xf32>
    %56 = vector.shape_cast %55 : vector<1x8x128xf32> to vector<8x128xf32>
    %57 = vector.shape_cast %53 : vector<8x128xf32> to vector<1x8x128xf32>
    tpu.vector_store %arg9[%c0_30, %c0_31, %c0_32], %57 {strides = array<i32>} : memref<1x8x128xf32, #tpu.memory_space<vmem>>, vector<1x8x128xf32>,
    %c7_i32 = arith.constant 7 : i32
    %58 = arith.cmpi eq, %arg0, %c7_i32 : i32
    %59 = arith.extui %58 : i1 to i32
    %c0_i32_33 = arith.constant 0 : i32
    %60 = arith.cmpi ne, %59, %c0_i32_33 : i32
    scf.if %60 {
      %c0_34 = arith.constant 0 : index
      %c0_35 = arith.constant 0 : index
      %61 = vector.load %arg10[%c0_34, %c0_35] : memref<8x128xf32, #tpu.memory_space<vmem>>, vector<8x128xf32>
      tpu.vector_store %arg10[%c0_34, %c0_35], %48 {strides = array<i32>} : memref<8x128xf32, #tpu.memory_space<vmem>>, vector<8x128xf32>,
    } else {
    }
    return
  }
  func.func @transform_0(%arg0: i32) -> (i32, i32, i32) {
    %c0_i32 = arith.constant 0 : i32
    %c0_i32_0 = arith.constant 0 : i32
    %c0_i32_1 = arith.constant 0 : i32
    return %arg0, %c0_i32, %c0_i32_0 : i32, i32, i32
  }
  func.func @transform_1(%arg0: i32) -> (i32, i32) {
    %c0_i32 = arith.constant 0 : i32
    %c0_i32_0 = arith.constant 0 : i32
    %c0_i32_1 = arith.constant 0 : i32
    return %c0_i32, %c0_i32_0 : i32, i32
  }
  func.func @transform_2(%arg0: i32) -> (i32, i32) {
    %c0_i32 = arith.constant 0 : i32
    %c0_i32_0 = arith.constant 0 : i32
    %c0_i32_1 = arith.constant 0 : i32
    return %c0_i32, %c0_i32_0 : i32, i32
  }
  func.func @transform_3(%arg0: i32) -> (i32, i32) {
    %c0_i32 = arith.constant 0 : i32
    %c0_i32_0 = arith.constant 0 : i32
    %c0_i32_1 = arith.constant 0 : i32
    return %c0_i32, %c0_i32_0 : i32, i32
  }
  func.func @transform_4(%arg0: i32) -> (i32, i32) {
    %c0_i32 = arith.constant 0 : i32
    %c0_i32_0 = arith.constant 0 : i32
    %c0_i32_1 = arith.constant 0 : i32
    return %c0_i32, %c0_i32_0 : i32, i32
  }
  func.func @transform_5(%arg0: i32) -> (i32, i32) {
    %c0_i32 = arith.constant 0 : i32
    %c0_i32_0 = arith.constant 0 : i32
    %c0_i32_1 = arith.constant 0 : i32
    return %c0_i32, %c0_i32_0 : i32, i32
  }
  func.func @transform_6(%arg0: i32) -> (i32, i32) {
    %c0_i32 = arith.constant 0 : i32
    %c0_i32_0 = arith.constant 0 : i32
    %c0_i32_1 = arith.constant 0 : i32
    return %c0_i32, %c0_i32_0 : i32, i32
  }
  func.func @transform_7(%arg0: i32) -> (i32, i32) {
    %c0_i32 = arith.constant 0 : i32
    %c0_i32_0 = arith.constant 0 : i32
    %c0_i32_1 = arith.constant 0 : i32
    return %c0_i32, %c0_i32_0 : i32, i32
  }
  func.func @transform_8(%arg0: i32) -> (i32, i32, i32) {
    %c0_i32 = arith.constant 0 : i32
    %c0_i32_0 = arith.constant 0 : i32
    %c0_i32_1 = arith.constant 0 : i32
    return %arg0, %c0_i32, %c0_i32_0 : i32, i32, i32
  }
  func.func @transform_9(%arg0: i32) -> (i32, i32) {
    %c0_i32 = arith.constant 0 : i32
    %c0_i32_0 = arith.constant 0 : i32
    %c0_i32_1 = arith.constant 0 : i32
    return %c0_i32, %c0_i32_0 : i32, i32
  }
}

</mosaic_0001>

<llo_original>
// kernel: tpu_custom_call.1
$region0: #{tpu_custom_call.1}
  #allocation0 [shape = 'u32[]', space=smem, size = 0x4, offset = 0x4, fixed_abs, tag = 'smem constant byte address 0x4 - core index']
  #allocation1 [shape = 'u32[144,128]{1,0:T(1,128)}', space=vmem, size = 0x12000, scoped, tag = 'internal scratch']
  #allocation2 [shape = 'f32[8,128]{1,0:T(8,128)}', space=vmem, size = 0x1000, scoped, tag = 'scratch operand']
  %s0 = inlined_call_operand.hbm [shape: f32[8,8,64], index: 0, kind: input, shape index: {}]
  %s1 = inlined_call_operand.hbm [shape: f32[8,128], index: 1, kind: input, shape index: {}, may-alias: {1,9}]
  %s2 = inlined_call_operand.hbm [shape: bf16[64,128], index: 2, kind: input, shape index: {}]
  %s3 = inlined_call_operand.hbm [shape: bf16[256,256], index: 3, kind: input, shape index: {}]
  %s4 = inlined_call_operand.hbm [shape: bf16[128,128], index: 4, kind: input, shape index: {}]
  %s5 = inlined_call_operand.hbm [shape: bf16[128,128], index: 5, kind: input, shape index: {}]
  %s6 = inlined_call_operand.hbm [shape: bf16[128,128], index: 6, kind: input, shape index: {}]
  %s7 = inlined_call_operand.vmem [shape: f32[1,768], index: 7, kind: input, shape index: {}]
  %s8 = inlined_call_operand.hbm [shape: f32[8,8,128], index: 8, kind: output, shape index: {0}]
  %s9 = inlined_call_operand.hbm [shape: f32[8,128], index: 9, kind: output, shape index: {1}, may-alias: {1,9}]
  %10 = xla_tuple %s8, %s9
  %s11 = sld [smem:[#allocation0]]
  $region109: #{tpu_custom_call.1} parent=0
    _
  %s13 = ssub.s32 1, %s11
  %s14 = scalar_select 0, %s13, %s11
  $region1: #{tpu_custom_call.1} parent=0
    #allocation3 [shape = 'u8[8192]{0}', space=vmem, size = 0x2000, scoped, tag = 'input window, operand 0']
    #allocation4 [shape = 's32[2]{0}', space=sflag, size = 0x8, scoped, tag = 'scoped memory for tpu_custom_call.1']
    #allocation5 [shape = 's32[2]{0}', space=sflag, size = 0x8, scoped, tag = 'scoped memory for tpu_custom_call.1']
    #allocation6 [shape = 'u8[4096]{0}', space=vmem, size = 0x1000, scoped, tag = 'input window, operand 1, single buffered']
    #allocation7 [shape = 's32[1]{0}', space=sflag, size = 0x4, scoped, tag = 'scoped memory for tpu_custom_call.1']
    #allocation8 [shape = 'u8[16384]{0}', space=vmem, size = 0x4000, scoped, tag = 'input window, operand 2, single buffered']
    #allocation9 [shape = 'u8[131072]{0}', space=vmem, size = 0x20000, scoped, tag = 'input window, operand 3, single buffered']
    #allocation10 [shape = 's32[1]{0}', space=sflag, size = 0x4, scoped, tag = 'scoped memory for tpu_custom_call.1']
    #allocation11 [shape = 'u8[32768]{0}', space=vmem, size = 0x8000, scoped, tag = 'input window, operand 4, single buffered']
    #allocation12 [shape = 'u8[32768]{0}', space=vmem, size = 0x8000, scoped, tag = 'input window, operand 5, single buffered']
    #allocation13 [shape = 's32[1]{0}', space=sflag, size = 0x4, scoped, tag = 'scoped memory for tpu_custom_call.1']
    #allocation14 [shape = 'u8[32768]{0}', space=vmem, size = 0x8000, scoped, tag = 'input window, operand 6, single buffered']
    #allocation15 [shape = 'u8[8192]{0}', space=vmem, size = 0x2000, scoped, tag = 'output window, operand 0']
    #allocation16 [shape = 'u8[4096]{0}', space=vmem, size = 0x1000, scoped, tag = 'output window, operand 1, single buffered']
    #allocation17 [shape = 's32[1]{0}', space=sflag, size = 0x4, scoped, tag = 'scoped memory for tpu_custom_call.1']
    %15 = vsyncpa [#allocation4], 0
    %s16 = scalar_lea.sflag [#allocation4], 1
    %17 = vsyncpa %s16, 0
    %18 = vsyncpa [#allocation7], 0
    %19 = vsyncpa [#allocation10], 0
    %20 = vsyncpa [#allocation13], 0
    %21 = vsyncpa [#allocation5], 0
    %s22 = scalar_lea.sflag [#allocation5], 1
    %23 = vsyncpa %s22, 0
    %24 = vsyncpa [#allocation17], 0
    loop: start=0, step=1, limit=10
    $region2: #{tpu_custom_call.1} parent=1 // loop_pre_header
      _
    $region3: #{tpu_custom_call.1} parent=1 // loop_header
      %s26 = sphi 0, %s30
      %p27 = scmp.ge.s32.totalorder %s26, 10
      %s36 = sphi 0, %s38
      %s39 = sphi 0, %s36
      %s40 = sphi 0, %s39
      %s56 = sphi 0, %s40
      %s60 = sphi 0, %s60
      %s62 = sphi 0, %s60
      %s63 = sphi 0, %s62
      %s77 = sphi 0, %s63
      %s81 = sphi 0, %s81
      %s83 = sphi 0, %s81
      %s84 = sphi 0, %s83
      %s98 = sphi 0, %s84
      %s102 = sphi 0, %s102
      %s104 = sphi 0, %s102
      %s105 = sphi 0, %s104
      %s119 = sphi 0, %s105
      %s123 = sphi 0, %s123
      %s125 = sphi 0, %s123
      %s126 = sphi 0, %s125
      %s140 = sphi 0, %s126
      %s144 = sphi 0, %s144
      %s146 = sphi 0, %s144
      %s147 = sphi 0, %s146
      %s161 = sphi 0, %s147
      %s165 = sphi 0, %s165
      %s167 = sphi 0, %s165
      %s168 = sphi 0, %s167
      %s182 = sphi 0, %s168
      %s186 = sphi 0, %s186
      %s188 = sphi 0, %s186
      %s189 = sphi 0, %s188
      %s203 = sphi 0, %s189
      %s209 = sphi 0, %s211
      %s212 = sphi 0, %s209
      %s213 = sphi 0, %s212
      %s229 = sphi 0, %s213
      %s233 = sphi 0, %s233
      %s235 = sphi 0, %s233
      %s236 = sphi 0, %s235
      %s250 = sphi 0, %s236
    $region4: #{tpu_custom_call.1} parent=1 // loop_header_branch
      %29 = sbr.rel (%p27) target = $region8
    $region5: #{tpu_custom_call.1} parent=1 // loop_body
      %s31 = ssub.s32 %s26, 1
      %s32 = ssub.s32 %s26, 2
      %s33 = sadd.s32 %s26, 1
      %s34 = ssub.s32 %s26, %s33
      %p35 = scmp.eq.s32.totalorder %s34, 0
      %s37 = sadd.s32 %s36, 1
      %s38 = scalar_select %p35, %s36, %s37
      %p41 = pneg %p35
      %p42 = scmp.eq.s32.totalorder %s26, 7
      %p43 = por %p41, %p42
      %p44 = scmp.ne.s32.totalorder %s36, %s39
      %p45 = scmp.eq.s32.totalorder %s26, 0
      %p46 = por %p44, %p45
      %p47 = scmp.ne.s32.totalorder %s36, %s39
      %p48 = scmp.eq.s32.totalorder %s31, 7
      %p49 = por %p47, %p48
      %p50 = scmp.ne.s32.totalorder %s39, %s40
      %p51 = scmp.eq.s32.totalorder %s31, 0
      %p52 = por %p50, %p51
      %p53 = scmp.ne.s32.totalorder %s39, %s40
      %p54 = scmp.eq.s32.totalorder %s32, 7
      %p55 = por %p53, %p54
      %p57 = scmp.ne.s32.totalorder %s40, %s56
      %p58 = scmp.eq.s32.totalorder %s32, 0
      %p59 = por %p57, %p58
      %s61 = sadd.s32 %s60, 1
      %p64 = scmp.eq.s32.totalorder %s26, 7
      %p65 = scmp.ne.s32.totalorder %s60, %s62
      %p66 = scmp.eq.s32.totalorder %s26, 0
      %p67 = por %p65, %p66
      %p68 = scmp.ne.s32.totalorder %s60, %s62
      %p69 = scmp.eq.s32.totalorder %s31, 7
      %p70 = por %p68, %p69
      %p71 = scmp.ne.s32.totalorder %s62, %s63
      %p72 = scmp.eq.s32.totalorder %s31, 0
      %p73 = por %p71, %p72
      %p74 = scmp.ne.s32.totalorder %s62, %s63
      %p75 = scmp.eq.s32.totalorder %s32, 7
      %p76 = por %p74, %p75
      %p78 = scmp.ne.s32.totalorder %s63, %s77
      %p79 = scmp.eq.s32.totalorder %s32, 0
      %p80 = por %p78, %p79
      %s82 = sadd.s32 %s81, 1
      %p85 = scmp.eq.s32.totalorder %s26, 7
      %p86 = scmp.ne.s32.totalorder %s81, %s83
      %p87 = scmp.eq.s32.totalorder %s26, 0
      %p88 = por %p86, %p87
      %p89 = scmp.ne.s32.totalorder %s81, %s83
      %p90 = scmp.eq.s32.totalorder %s31, 7
      %p91 = por %p89, %p90
      %p92 = scmp.ne.s32.totalorder %s83, %s84
      %p93 = scmp.eq.s32.totalorder %s31, 0
      %p94 = por %p92, %p93
      %p95 = scmp.ne.s32.totalorder %s83, %s84
      %p96 = scmp.eq.s32.totalorder %s32, 7
      %p97 = por %p95, %p96
      %p99 = scmp.ne.s32.totalorder %s84, %s98
      %p100 = scmp.eq.s32.totalorder %s32, 0
      %p101 = por %p99, %p100
      %s103 = sadd.s32 %s102, 1
      %p106 = scmp.eq.s32.totalorder %s26, 7
      %p107 = scmp.ne.s32.totalorder %s102, %s104
      %p108 = scmp.eq.s32.totalorder %s26, 0
      %p109 = por %p107, %p108
      %p110 = scmp.ne.s32.totalorder %s102, %s104
      %p111 = scmp.eq.s32.totalorder %s31, 7
      %p112 = por %p110, %p111
      %p113 = scmp.ne.s32.totalorder %s104, %s105
      %p114 = scmp.eq.s32.totalorder %s31, 0
      %p115 = por %p113, %p114
      %p116 = scmp.ne.s32.totalorder %s104, %s105
      %p117 = scmp.eq.s32.totalorder %s32, 7
      %p118 = por %p116, %p117
      %p120 = scmp.ne.s32.totalorder %s105, %s119
      %p121 = scmp.eq.s32.totalorder %s32, 0
      %p122 = por %p120, %p121
      %s124 = sadd.s32 %s123, 1
      %p127 = scmp.eq.s32.totalorder %s26, 7
      %p128 = scmp.ne.s32.totalorder %s123, %s125
      %p129 = scmp.eq.s32.totalorder %s26, 0
      %p130 = por %p128, %p129
      %p131 = scmp.ne.s32.totalorder %s123, %s125
      %p132 = scmp.eq.s32.totalorder %s31, 7
      %p133 = por %p131, %p132
      %p134 = scmp.ne.s32.totalorder %s125, %s126
      %p135 = scmp.eq.s32.totalorder %s31, 0
      %p136 = por %p134, %p135
      %p137 = scmp.ne.s32.totalorder %s125, %s126
      %p138 = scmp.eq.s32.totalorder %s32, 7
      %p139 = por %p137, %p138
      %p141 = scmp.ne.s32.totalorder %s126, %s140
      %p142 = scmp.eq.s32.totalorder %s32, 0
      %p143 = por %p141, %p142
      %s145 = sadd.s32 %s144, 1
      %p148 = scmp.eq.s32.totalorder %s26, 7
      %p149 = scmp.ne.s32.totalorder %s144, %s146
      %p150 = scmp.eq.s32.totalorder %s26, 0
      %p151 = por %p149, %p150
      %p152 = scmp.ne.s32.totalorder %s144, %s146
      %p153 = scmp.eq.s32.totalorder %s31, 7
      %p154 = por %p152, %p153
      %p155 = scmp.ne.s32.totalorder %s146, %s147
      %p156 = scmp.eq.s32.totalorder %s31, 0
      %p157 = por %p155, %p156
      %p158 = scmp.ne.s32.totalorder %s146, %s147
      %p159 = scmp.eq.s32.totalorder %s32, 7
      %p160 = por %p158, %p159
      %p162 = scmp.ne.s32.totalorder %s147, %s161
      %p163 = scmp.eq.s32.totalorder %s32, 0
      %p164 = por %p162, %p163
      %s166 = sadd.s32 %s165, 1
      %p169 = scmp.eq.s32.totalorder %s26, 7
      %p170 = scmp.ne.s32.totalorder %s165, %s167
      %p171 = scmp.eq.s32.totalorder %s26, 0
      %p172 = por %p170, %p171
      %p173 = scmp.ne.s32.totalorder %s165, %s167
      %p174 = scmp.eq.s32.totalorder %s31, 7
      %p175 = por %p173, %p174
      %p176 = scmp.ne.s32.totalorder %s167, %s168
      %p177 = scmp.eq.s32.totalorder %s31, 0
      %p178 = por %p176, %p177
      %p179 = scmp.ne.s32.totalorder %s167, %s168
      %p180 = scmp.eq.s32.totalorder %s32, 7
      %p181 = por %p179, %p180
      %p183 = scmp.ne.s32.totalorder %s168, %s182
      %p184 = scmp.eq.s32.totalorder %s32, 0
      %p185 = por %p183, %p184
      %s187 = sadd.s32 %s186, 1
      %p190 = scmp.eq.s32.totalorder %s26, 7
      %p191 = scmp.ne.s32.totalorder %s186, %s188
      %p192 = scmp.eq.s32.totalorder %s26, 0
      %p193 = por %p191, %p192
      %p194 = scmp.ne.s32.totalorder %s186, %s188
      %p195 = scmp.eq.s32.totalorder %s31, 7
      %p196 = por %p194, %p195
      %p197 = scmp.ne.s32.totalorder %s188, %s189
      %p198 = scmp.eq.s32.totalorder %s31, 0
      %p199 = por %p197, %p198
      %p200 = scmp.ne.s32.totalorder %s188, %s189
      %p201 = scmp.eq.s32.totalorder %s32, 7
      %p202 = por %p200, %p201
      %p204 = scmp.ne.s32.totalorder %s189, %s203
      %p205 = scmp.eq.s32.totalorder %s32, 0
      %p206 = por %p204, %p205
      %s207 = ssub.s32 %s26, %s33
      %p208 = scmp.eq.s32.totalorder %s207, 0
      %s210 = sadd.s32 %s209, 1
      %s211 = scalar_select %p208, %s209, %s210
      %p214 = pneg %p208
      %p215 = scmp.eq.s32.totalorder %s26, 7
      %p216 = por %p214, %p215
      %p217 = scmp.ne.s32.totalorder %s209, %s212
      %p218 = scmp.eq.s32.totalorder %s26, 0
      %p219 = por %p217, %p218
      %p220 = scmp.ne.s32.totalorder %s209, %s212
      %p221 = scmp.eq.s32.totalorder %s31, 7
      %p222 = por %p220, %p221
      %p223 = scmp.ne.s32.totalorder %s212, %s213
      %p224 = scmp.eq.s32.totalorder %s31, 0
      %p225 = por %p223, %p224
      %p226 = scmp.ne.s32.totalorder %s212, %s213
      %p227 = scmp.eq.s32.totalorder %s32, 7
      %p228 = por %p226, %p227
      %p230 = scmp.ne.s32.totalorder %s213, %s229
      %p231 = scmp.eq.s32.totalorder %s32, 0
      %p232 = por %p230, %p231
      %s234 = sadd.s32 %s233, 1
      %p237 = scmp.eq.s32.totalorder %s26, 7
      %p238 = scmp.ne.s32.totalorder %s233, %s235
      %p239 = scmp.eq.s32.totalorder %s26, 0
      %p240 = por %p238, %p239
      %p241 = scmp.ne.s32.totalorder %s233, %s235
      %p242 = scmp.eq.s32.totalorder %s31, 7
      %p243 = por %p241, %p242
      %p244 = scmp.ne.s32.totalorder %s235, %s236
      %p245 = scmp.eq.s32.totalorder %s31, 0
      %p246 = por %p244, %p245
      %p247 = scmp.ne.s32.totalorder %s235, %s236
      %p248 = scmp.eq.s32.totalorder %s32, 7
      %p249 = por %p247, %p248
      %p251 = scmp.ne.s32.totalorder %s236, %s250
      %p252 = scmp.eq.s32.totalorder %s32, 0
      %p253 = por %p251, %p252
      %p254 = scmp.le.s32.totalorder 1, %s26
      %p255 = scmp.lt.s32.totalorder %s26, 9
      %p256 = pnand %p254, %p255
      %p257 = pneg %p256
      // Predicated region
      $region9: #{tpu_custom_call.1} parent=5 // pred_check
        _
      $region10: #{tpu_custom_call.1} parent=5 // pred_check_branch
        %259 = sbr.rel (%p256) target = $region12
      $region11: #{tpu_custom_call.1} parent=5 // pred_region
        %s260 = ssub.s32 %s26, 1
        // Predicated region
        $region13: #{tpu_custom_call.1} parent=11 // pred_check
          %p261 = pneg %p73
        $region14: #{tpu_custom_call.1} parent=11 // pred_check_branch
          %263 = sbr.rel (%p261) target = $region16
        $region15: #{tpu_custom_call.1} parent=11 // pred_region
          %s265 = ssub.s32 128, 128
          %266 = vsyncadd [#allocation7], %s265
          %s268 = sshll.u32 [#allocation6], 4
          %s269 = int_to_ptr.vmem [resolvable:$true] %s268
          %271 = dma.hbm_to_vmem [thread:$0]  %s1, 128, %s269, [#allocation7]
        $region16: #{tpu_custom_call.1} parent=11 // pred_fallthru
          _
        // Predicated region
        $region17: #{tpu_custom_call.1} parent=11 // pred_check
          %p272 = pneg %p94
        $region18: #{tpu_custom_call.1} parent=11 // pred_check_branch
          %274 = sbr.rel (%p272) target = $region20
        $region19: #{tpu_custom_call.1} parent=11 // pred_region
          %s276 = ssub.s32 512, 512
          %277 = vsyncadd [#allocation7], %s276
          %s278 = sshll.u32 [#allocation8], 4
          %s279 = int_to_ptr.vmem [resolvable:$true] %s278
          %284 = dma.hbm_to_vmem [thread:$0]  %s2, 512, %s279, [#allocation7], 64, 64, 4
        $region20: #{tpu_custom_call.1} parent=11 // pred_fallthru
          _
        // Predicated region
        $region21: #{tpu_custom_call.1} parent=11 // pred_check
          %p285 = pneg %p115
        $region22: #{tpu_custom_call.1} parent=11 // pred_check_branch
          %287 = sbr.rel (%p285) target = $region24
        $region23: #{tpu_custom_call.1} parent=11 // pred_region
          %s289 = ssub.s32 4096, 4096
          %290 = vsyncadd [#allocation10], %s289
          %s291 = sshll.u32 [#allocation9], 4
          %s292 = int_to_ptr.vmem [resolvable:$true] %s291
          %297 = dma.hbm_to_vmem [thread:$0]  %s3, 4096, %s292, [#allocation10], 128, 128, 8
        $region24: #{tpu_custom_call.1} parent=11 // pred_fallthru
          _
        // Predicated region
        $region25: #{tpu_custom_call.1} parent=11 // pred_check
          %p298 = pneg %p136
        $region26: #{tpu_custom_call.1} parent=11 // pred_check_branch
          %300 = sbr.rel (%p298) target = $region28
        $region27: #{tpu_custom_call.1} parent=11 // pred_region
          %s302 = ssub.s32 1024, 1024
          %303 = vsyncadd [#allocation10], %s302
          %s304 = sshll.u32 [#allocation11], 4
          %s305 = int_to_ptr.vmem [resolvable:$true] %s304
          %310 = dma.hbm_to_vmem [thread:$0]  %s4, 1024, %s305, [#allocation10], 64, 64, 4
        $region28: #{tpu_custom_call.1} parent=11 // pred_fallthru
          _
        // Predicated region
        $region29: #{tpu_custom_call.1} parent=11 // pred_check
          %p311 = pneg %p157
        $region30: #{tpu_custom_call.1} parent=11 // pred_check_branch
          %313 = sbr.rel (%p311) target = $region32
        $region31: #{tpu_custom_call.1} parent=11 // pred_region
          %s315 = ssub.s32 1024, 1024
          %316 = vsyncadd [#allocation13], %s315
          %s317 = sshll.u32 [#allocation12], 4
          %s318 = int_to_ptr.vmem [resolvable:$true] %s317
          %323 = dma.hbm_to_vmem [thread:$0]  %s5, 1024, %s318, [#allocation13], 64, 64, 4
        $region32: #{tpu_custom_call.1} parent=11 // pred_fallthru
          _
        // Predicated region
        $region33: #{tpu_custom_call.1} parent=11 // pred_check
          %p324 = pneg %p178
        $region34: #{tpu_custom_call.1} parent=11 // pred_check_branch
          %326 = sbr.rel (%p324) target = $region36
        $region35: #{tpu_custom_call.1} parent=11 // pred_region
          %s328 = ssub.s32 1024, 1024
          %329 = vsyncadd [#allocation13], %s328
          %s330 = sshll.u32 [#allocation14], 4
          %s331 = int_to_ptr.vmem [resolvable:$true] %s330
          %336 = dma.hbm_to_vmem [thread:$0]  %s6, 1024, %s331, [#allocation13], 64, 64, 4
        $region36: #{tpu_custom_call.1} parent=11 // pred_fallthru
          _
        // Predicated region
        $region37: #{tpu_custom_call.1} parent=11 // pred_check
          %p337 = pneg %p199
        $region38: #{tpu_custom_call.1} parent=11 // pred_check_branch
          %339 = sbr.rel (%p337) target = $region40
        $region39: #{tpu_custom_call.1} parent=11 // pred_region
          _
        $region40: #{tpu_custom_call.1} parent=11 // pred_fallthru
          _
      $region12: #{tpu_custom_call.1} parent=5 // pred_fallthru
        _
      %p340 = scmp.lt.s32.totalorder %s26, 8
      // Predicated region
      $region41: #{tpu_custom_call.1} parent=5 // pred_check
        %p341 = pneg %p340
      $region42: #{tpu_custom_call.1} parent=5 // pred_check_branch
        %343 = sbr.rel (%p341) target = $region44
      $region43: #{tpu_custom_call.1} parent=5 // pred_region
        // Predicated region
        $region45: #{tpu_custom_call.1} parent=43 // pred_check
          %p344 = pneg %p46
        $region46: #{tpu_custom_call.1} parent=43 // pred_check_branch
          %346 = sbr.rel (%p344) target = $region48
        $region47: #{tpu_custom_call.1} parent=43 // pred_region
          %s347 = sand.u32 %s36, 1
          %s348 = scalar_lea.sflag [#allocation4], %s347
          %s349 = sand.u32 %s36, 1
          %s350 = smul.addr %s349, 8
          %s351 = scalar_lea.vmem [#allocation3], %s350
          %s353 = ssub.s32 128, 128
          %354 = vsyncadd %s348, %s353
          %s355 = smul.addr %s26, 128
          %s356 = scalar_lea.hbm %s0, %s355
          %s358 = sshll.u32 %s351, 4
          %s359 = int_to_ptr.vmem [resolvable:$true] %s358
          %361 = dma.hbm_to_vmem [thread:$0]  %s356, 128, %s359, %s348
        $region48: #{tpu_custom_call.1} parent=43 // pred_fallthru
          _
      $region44: #{tpu_custom_call.1} parent=5 // pred_fallthru
        _
      %p362 = scmp.le.s32.totalorder 1, %s26
      %p363 = scmp.lt.s32.totalorder %s26, 9
      %p364 = pnand %p362, %p363
      %p365 = pneg %p364
      // Predicated region
      $region49: #{tpu_custom_call.1} parent=5 // pred_check
        _
      $region50: #{tpu_custom_call.1} parent=5 // pred_check_branch
        %367 = sbr.rel (%p364) target = $region52
      $region51: #{tpu_custom_call.1} parent=5 // pred_region
        %s368 = ssub.s32 %s26, 1
        %s369 = sand.u32 %s39, 1
        %s370 = scalar_lea.sflag [#allocation4], %s369
        %s371 = sand.u32 %s39, 1
        %s372 = smul.addr %s371, 8
        %s373 = scalar_lea.vmem [#allocation3], %s372
        // Predicated region
        $region53: #{tpu_custom_call.1} parent=51 // pred_check
          %p374 = pneg %p52
        $region54: #{tpu_custom_call.1} parent=51 // pred_check_branch
          %376 = sbr.rel (%p374) target = $region56
        $region55: #{tpu_custom_call.1} parent=51 // pred_region
          %377 = dma.done %s370, 128
        $region56: #{tpu_custom_call.1} parent=51 // pred_fallthru
          _
        // Predicated region
        $region57: #{tpu_custom_call.1} parent=51 // pred_check
          %p378 = pneg %p73
        $region58: #{tpu_custom_call.1} parent=51 // pred_check_branch
          %380 = sbr.rel (%p378) target = $region60
        $region59: #{tpu_custom_call.1} parent=51 // pred_region
          %381 = dma.done [#allocation7], 128
        $region60: #{tpu_custom_call.1} parent=51 // pred_fallthru
          _
        // Predicated region
        $region61: #{tpu_custom_call.1} parent=51 // pred_check
          %p382 = pneg %p94
        $region62: #{tpu_custom_call.1} parent=51 // pred_check_branch
          %384 = sbr.rel (%p382) target = $region64
        $region63: #{tpu_custom_call.1} parent=51 // pred_region
          %385 = dma.done [#allocation7], 512
        $region64: #{tpu_custom_call.1} parent=51 // pred_fallthru
          _
        // Predicated region
        $region65: #{tpu_custom_call.1} parent=51 // pred_check
          %p386 = pneg %p115
        $region66: #{tpu_custom_call.1} parent=51 // pred_check_branch
          %388 = sbr.rel (%p386) target = $region68
        $region67: #{tpu_custom_call.1} parent=51 // pred_region
          %389 = dma.done [#allocation10], 4096
        $region68: #{tpu_custom_call.1} parent=51 // pred_fallthru
          _
        // Predicated region
        $region69: #{tpu_custom_call.1} parent=51 // pred_check
          %p390 = pneg %p136
        $region70: #{tpu_custom_call.1} parent=51 // pred_check_branch
          %392 = sbr.rel (%p390) target = $region72
        $region71: #{tpu_custom_call.1} parent=51 // pred_region
          %393 = dma.done [#allocation10], 1024
        $region72: #{tpu_custom_call.1} parent=51 // pred_fallthru
          _
        // Predicated region
        $region73: #{tpu_custom_call.1} parent=51 // pred_check
          %p394 = pneg %p157
        $region74: #{tpu_custom_call.1} parent=51 // pred_check_branch
          %396 = sbr.rel (%p394) target = $region76
        $region75: #{tpu_custom_call.1} parent=51 // pred_region
          %397 = dma.done [#allocation13], 1024
        $region76: #{tpu_custom_call.1} parent=51 // pred_fallthru
          _
        // Predicated region
        $region77: #{tpu_custom_call.1} parent=51 // pred_check
          %p398 = pneg %p178
        $region78: #{tpu_custom_call.1} parent=51 // pred_check_branch
          %400 = sbr.rel (%p398) target = $region80
        $region79: #{tpu_custom_call.1} parent=51 // pred_region
          %401 = dma.done [#allocation13], 1024
        $region80: #{tpu_custom_call.1} parent=51 // pred_fallthru
          _
        %s402 = sand.u32 %s39, 1
        %s403 = scalar_lea.sflag [#allocation4], %s402
        %s404 = sand.u32 %s39, 1
        %s405 = smul.addr %s404, 8
        %s406 = scalar_lea.vmem [#allocation3], %s405
        %p407 = pneg %p52
        %p408 = pneg %p49
        %p409 = pneg %p73
        %p410 = pneg %p70
        %p411 = pneg %p94
        %p412 = pneg %p91
        %p413 = pneg %p115
        %p414 = pneg %p112
        %p415 = pneg %p136
        %p416 = pneg %p133
        %p417 = pneg %p157
        %p418 = pneg %p154
        %p419 = pneg %p178
        %p420 = pneg %p175
        %p421 = pneg %p199
        %p422 = pneg %p196
        %p423 = pneg %p225
        %p424 = pneg %p222
        %s425 = sand.u32 %s212, 1
        %s426 = scalar_lea.sflag [#allocation5], %s425
        %s427 = sand.u32 %s212, 1
        %s428 = smul.addr %s427, 8
        %s429 = scalar_lea.vmem [#allocation15], %s428
        %p430 = pneg %p246
        %p431 = pneg %p243
        %v433 = vld [vmem:[%s7] sm:$0x1]
        %v434 = vld [vmem:[%s7 + $0x1] sm:$0x3]
        %v435 = vld [vmem:[%s7 + $0x3] sm:$0x1]
        %v436 = vld [vmem:[%s7 + $0x4] sm:$0x1]
        %v437 = vld [vmem:[%s7 + $0x5] sm:$0x1]
        %p438 = scmp.eq.s32.totalorder %s31, 0
        // Predicated region
        $region81: #{tpu_custom_call.1} parent=51 // pred_check
          %p439 = pneg %p438
        $region82: #{tpu_custom_call.1} parent=51 // pred_check_branch
          %441 = sbr.rel (%p439) target = $region84
        $region83: #{tpu_custom_call.1} parent=51 // pred_region
          %v442 = vld [vmem:[#allocation6] sm:$0xff]
          %443 = vst [vmem:[#allocation2] sm:$0xff] %v442
        $region84: #{tpu_custom_call.1} parent=51 // pred_fallthru
          _
        %v444 = vld [vmem:[#allocation2] sm:$0xff]
        %v445 = vld [vmem:[%s373] sm:$0xff]
        %v446 = vpack.c.bf16 %v445, %v445
        %v447 = vld [vmem:[#allocation8] sm:$0xf]
        %v448 = vld [vmem:[#allocation8 + $0x4] sm:$0xf]
        %v449 = vld [vmem:[#allocation8 + $0x8] sm:$0xf]
        %v450 = vld [vmem:[#allocation8 + $0xc] sm:$0xf]
        %v451 = vld [vmem:[#allocation8 + $0x10] sm:$0xf]
        %v452 = vld [vmem:[#allocation8 + $0x14] sm:$0xf]
        %v453 = vld [vmem:[#allocation8 + $0x18] sm:$0xf]
        %v454 = vld [vmem:[#allocation8 + $0x1c] sm:$0xf]
        %v456 = vlaneseq
        %v457 = vshrl.u32 %v456, 7
        %v458 = vsub.s32 0, %v457
        %v459 = vrot.slane %v433, %v458
        %v469 = vunpack.c.l.b16 %v447
        %v470 = vunpack.c.l.b16 %v448
        %v471 = vunpack.c.l.b16 %v449
        %v472 = vunpack.c.l.b16 %v450
        %v473 = vunpack.c.l.b16 %v451
        %v474 = vunpack.c.l.b16 %v452
        %v475 = vunpack.c.l.b16 %v453
        %v476 = vunpack.c.l.b16 %v454
        %v477 = vpack.c.b16 %v470, %v469
        %v478 = vpack.c.b16 %v472, %v471
        %v479 = vpack.c.b16 %v474, %v473
        %v480 = vpack.c.b16 %v476, %v475
        %vm485 = vcmask 523264
        %v487 = vsel %vm485, %v446, 0
        %489 = vmatprep.subr.bf16.mxu0 0
        %490 = vmatpush1.bf16.msra.mxu0 0
        %491 = vmatprep.subr.bf16.mxu0 0
        %492 = vmatpush1.bf16.msra.mxu0 0
        %493 = vmatprep.subr.bf16.mxu0 0
        %494 = vmatpush1.bf16.msra.mxu0 0
        %495 = vmatprep.subr.bf16.mxu0 0
        %496 = vmatpush1.bf16.msra.mxu0 0
        %497 = vmatprep.subr.bf16.mxu0 0
        %498 = vmatpush1.bf16.msra.mxu0 %v480
        %499 = vmatprep.subr.bf16.mxu0 0
        %500 = vmatpush1.bf16.msra.mxu0 %v479
        %501 = vmatprep.subr.bf16.mxu0 0
        %502 = vmatpush1.bf16.msra.mxu0 %v478
        %503 = vmatprep.subr.bf16.mxu0 0
        %504 = vmatpush1.bf16.msra.mxu0 %v477
        %505 = vmatprep.subr.bf16.mxu0 0
        %506 = vmatpush2.bf16.msra.mxu0 0
        %507 = vmatprep.subr.bf16.mxu0 0
        %508 = vmatpush2.bf16.msra.mxu0 0
        %509 = vmatprep.subr.bf16.mxu0 0
        %510 = vmatpush2.bf16.msra.mxu0 0
        %511 = vmatprep.subr.bf16.mxu0 0
        %512 = vmatpush2.bf16.msra.mxu0 0
        %513 = vmatprep.subr.bf16.mxu0 0
        %514 = vmatpush2.bf16.msra.mxu0 0
        %515 = vmatprep.subr.bf16.mxu0 0
        %516 = vmatpush2.bf16.msra.mxu0 0
        %517 = vmatprep.subr.bf16.mxu0 0
        %518 = vmatpush2.bf16.msra.mxu0 0
        %519 = vmatprep.subr.bf16.mxu0 0
        %520 = vmatpush2.bf16.msra.mxu0 0
        %521 = vmatprep.mubr.bf16.mxu0 0
        %522 = vmatmul.mubr.bf16.gmra.mxu0 %v487
        %v523 = vpop.f32.mrf.mxu0
        %v524 = vadd.f32 %v459, %v523
        %v525 = vpop.f32.mrf.mxu0
        %v526 = vpop.f32.mrf.mxu0
        %v527 = vpop.f32.mrf.mxu0
        %528 = vdwg.mxu0
        %v529 = vmax.f32 %v524, 0.0
        %v530 = vpack.c.bf16 %v529, %v529
        %v531 = vpack.c.bf16 %v444, %v444
        %v532 = vld [vmem:[#allocation9] sm:$0xff]
        %v533 = vld [vmem:[#allocation9 + $0x8] sm:$0xff]
        %v534 = vld [vmem:[#allocation9 + $0x10] sm:$0xff]
        %v535 = vld [vmem:[#allocation9 + $0x18] sm:$0xff]
        %v536 = vld [vmem:[#allocation9 + $0x20] sm:$0xff]
        %v537 = vld [vmem:[#allocation9 + $0x28] sm:$0xff]
        %v538 = vld [vmem:[#allocation9 + $0x30] sm:$0xff]
        %v539 = vld [vmem:[#allocation9 + $0x38] sm:$0xff]
        %v540 = vld [vmem:[#allocation9 + $0x40] sm:$0xff]
        %v541 = vld [vmem:[#allocation9 + $0x48] sm:$0xff]
        %v542 = vld [vmem:[#allocation9 + $0x50] sm:$0xff]
        %v543 = vld [vmem:[#allocation9 + $0x58] sm:$0xff]
        %v544 = vld [vmem:[#allocation9 + $0x60] sm:$0xff]
        %v545 = vld [vmem:[#allocation9 + $0x68] sm:$0xff]
        %v546 = vld [vmem:[#allocation9 + $0x70] sm:$0xff]
        %v547 = vld [vmem:[#allocation9 + $0x78] sm:$0xff]
        %v548 = vld [vmem:[#allocation9 + $0x80] sm:$0xff]
        %v549 = vld [vmem:[#allocation9 + $0x88] sm:$0xff]
        %v550 = vld [vmem:[#allocation9 + $0x90] sm:$0xff]
        %v551 = vld [vmem:[#allocation9 + $0x98] sm:$0xff]
        %v552 = vld [vmem:[#allocation9 + $0xa0] sm:$0xff]
        %v553 = vld [vmem:[#allocation9 + $0xa8] sm:$0xff]
        %v554 = vld [vmem:[#allocation9 + $0xb0] sm:$0xff]
        %v555 = vld [vmem:[#allocation9 + $0xb8] sm:$0xff]
        %v556 = vld [vmem:[#allocation9 + $0xc0] sm:$0xff]
        %v557 = vld [vmem:[#allocation9 + $0xc8] sm:$0xff]
        %v558 = vld [vmem:[#allocation9 + $0xd0] sm:$0xff]
        %v559 = vld [vmem:[#allocation9 + $0xd8] sm:$0xff]
        %v560 = vld [vmem:[#allocation9 + $0xe0] sm:$0xff]
        %v561 = vld [vmem:[#allocation9 + $0xe8] sm:$0xff]
        %v562 = vld [vmem:[#allocation9 + $0xf0] sm:$0xff]
        %v563 = vld [vmem:[#allocation9 + $0xf8] sm:$0xff]
        %v565 = vlaneseq
        %v566 = vshrl.u32 %v565, 7
        %v567 = vsub.s32 0, %v566
        %v568 = vrot.slane %v434, %v567
        %v569 = vlaneseq
        %v570 = vshrl.u32 %v569, 7
        %v571 = vsub.s32 1, %v570
        %v572 = vrot.slane %v434, %v571
        %v607 = vunpack.c.l.b16 %v532
        %v608 = vunpack.c.h.b16 %v532
        %v609 = vunpack.c.l.b16 %v533
        %v610 = vunpack.c.h.b16 %v533
        %v611 = vunpack.c.l.b16 %v534
        %v612 = vunpack.c.h.b16 %v534
        %v613 = vunpack.c.l.b16 %v535
        %v614 = vunpack.c.h.b16 %v535
        %v615 = vunpack.c.l.b16 %v536
        %v616 = vunpack.c.h.b16 %v536
        %v617 = vunpack.c.l.b16 %v537
        %v618 = vunpack.c.h.b16 %v537
        %v619 = vunpack.c.l.b16 %v538
        %v620 = vunpack.c.h.b16 %v538
        %v621 = vunpack.c.l.b16 %v539
        %v622 = vunpack.c.h.b16 %v539
        %v623 = vunpack.c.l.b16 %v540
        %v624 = vunpack.c.h.b16 %v540
        %v625 = vunpack.c.l.b16 %v541
        %v626 = vunpack.c.h.b16 %v541
        %v627 = vunpack.c.l.b16 %v542
        %v628 = vunpack.c.h.b16 %v542
        %v629 = vunpack.c.l.b16 %v543
        %v630 = vunpack.c.h.b16 %v543
        %v631 = vunpack.c.l.b16 %v544
        %v632 = vunpack.c.h.b16 %v544
        %v633 = vunpack.c.l.b16 %v545
        %v634 = vunpack.c.h.b16 %v545
        %v635 = vunpack.c.l.b16 %v546
        %v636 = vunpack.c.h.b16 %v546
        %v637 = vunpack.c.l.b16 %v547
        %v638 = vunpack.c.h.b16 %v547
        %v639 = vunpack.c.l.b16 %v548
        %v640 = vunpack.c.h.b16 %v548
        %v641 = vunpack.c.l.b16 %v549
        %v642 = vunpack.c.h.b16 %v549
        %v643 = vunpack.c.l.b16 %v550
        %v644 = vunpack.c.h.b16 %v550
        %v645 = vunpack.c.l.b16 %v551
        %v646 = vunpack.c.h.b16 %v551
        %v647 = vunpack.c.l.b16 %v552
        %v648 = vunpack.c.h.b16 %v552
        %v649 = vunpack.c.l.b16 %v553
        %v650 = vunpack.c.h.b16 %v553
        %v651 = vunpack.c.l.b16 %v554
        %v652 = vunpack.c.h.b16 %v554
        %v653 = vunpack.c.l.b16 %v555
        %v654 = vunpack.c.h.b16 %v555
        %v655 = vunpack.c.l.b16 %v556
        %v656 = vunpack.c.h.b16 %v556
        %v657 = vunpack.c.l.b16 %v557
        %v658 = vunpack.c.h.b16 %v557
        %v659 = vunpack.c.l.b16 %v558
        %v660 = vunpack.c.h.b16 %v558
        %v661 = vunpack.c.l.b16 %v559
        %v662 = vunpack.c.h.b16 %v559
        %v663 = vunpack.c.l.b16 %v560
        %v664 = vunpack.c.h.b16 %v560
        %v665 = vunpack.c.l.b16 %v561
        %v666 = vunpack.c.h.b16 %v561
        %v667 = vunpack.c.l.b16 %v562
        %v668 = vunpack.c.h.b16 %v562
        %v669 = vunpack.c.l.b16 %v563
        %v670 = vunpack.c.h.b16 %v563
        %v671 = vpack.c.b16 %v609, %v607
        %v672 = vpack.c.b16 %v610, %v608
        %v673 = vpack.c.b16 %v613, %v611
        %v674 = vpack.c.b16 %v614, %v612
        %v675 = vpack.c.b16 %v617, %v615
        %v676 = vpack.c.b16 %v618, %v616
        %v677 = vpack.c.b16 %v621, %v619
        %v678 = vpack.c.b16 %v622, %v620
        %v679 = vpack.c.b16 %v625, %v623
        %v680 = vpack.c.b16 %v626, %v624
        %v681 = vpack.c.b16 %v629, %v627
        %v682 = vpack.c.b16 %v630, %v628
        %v683 = vpack.c.b16 %v633, %v631
        %v684 = vpack.c.b16 %v634, %v632
        %v685 = vpack.c.b16 %v637, %v635
        %v686 = vpack.c.b16 %v638, %v636
        %v687 = vpack.c.b16 %v641, %v639
        %v688 = vpack.c.b16 %v642, %v640
        %v689 = vpack.c.b16 %v645, %v643
        %v690 = vpack.c.b16 %v646, %v644
        %v691 = vpack.c.b16 %v649, %v647
        %v692 = vpack.c.b16 %v650, %v648
        %v693 = vpack.c.b16 %v653, %v651
        %v694 = vpack.c.b16 %v654, %v652
        %v695 = vpack.c.b16 %v657, %v655
        %v696 = vpack.c.b16 %v658, %v656
        %v697 = vpack.c.b16 %v661, %v659
        %v698 = vpack.c.b16 %v662, %v660
        %v699 = vpack.c.b16 %v665, %v663
        %v700 = vpack.c.b16 %v666, %v664
        %v701 = vpack.c.b16 %v669, %v667
        %v702 = vpack.c.b16 %v670, %v668
        %735 = vmatprep.subr.bf16.mxu0 %v686
        %736 = vmatpush1.bf16.msra.mxu0 %v685
        %737 = vmatprep.subr.bf16.mxu0 %v684
        %738 = vmatpush1.bf16.msra.mxu0 %v683
        %739 = vmatprep.subr.bf16.mxu0 %v682
        %740 = vmatpush1.bf16.msra.mxu0 %v681
        %741 = vmatprep.subr.bf16.mxu0 %v680
        %742 = vmatpush1.bf16.msra.mxu0 %v679
        %743 = vmatprep.subr.bf16.mxu0 %v678
        %744 = vmatpush1.bf16.msra.mxu0 %v677
        %745 = vmatprep.subr.bf16.mxu0 %v676
        %746 = vmatpush1.bf16.msra.mxu0 %v675
        %747 = vmatprep.subr.bf16.mxu0 %v674
        %748 = vmatpush1.bf16.msra.mxu0 %v673
        %749 = vmatprep.subr.bf16.mxu0 %v672
        %750 = vmatpush1.bf16.msra.mxu0 %v671
        %751 = vmatprep.subr.bf16.mxu0 %v702
        %752 = vmatpush2.bf16.msra.mxu0 %v701
        %753 = vmatprep.subr.bf16.mxu0 %v700
        %754 = vmatpush2.bf16.msra.mxu0 %v699
        %755 = vmatprep.subr.bf16.mxu0 %v698
        %756 = vmatpush2.bf16.msra.mxu0 %v697
        %757 = vmatprep.subr.bf16.mxu0 %v696
        %758 = vmatpush2.bf16.msra.mxu0 %v695
        %759 = vmatprep.subr.bf16.mxu0 %v694
        %760 = vmatpush2.bf16.msra.mxu0 %v693
        %761 = vmatprep.subr.bf16.mxu0 %v692
        %762 = vmatpush2.bf16.msra.mxu0 %v691
        %763 = vmatprep.subr.bf16.mxu0 %v690
        %764 = vmatpush2.bf16.msra.mxu0 %v689
        %765 = vmatprep.subr.bf16.mxu0 %v688
        %766 = vmatpush2.bf16.msra.mxu0 %v687
        %767 = vmatprep.mubr.bf16.mxu0 %v531
        %768 = vmatmul.mubr.bf16.gmra.mxu0 %v530
        %v769 = vpop.f32.mrf.mxu0
        %v770 = vadd.f32 %v568, %v769
        %v771 = vpop.f32.mrf.mxu0
        %v772 = vadd.f32 %v572, %v771
        %v773 = vpop.f32.mrf.mxu0
        %v774 = vpop.f32.mrf.mxu0
        %775 = vdwg.mxu0
        %v776 = vxor.u32 %v770, 2147483648
        %v777 = vxor.u32 %v772, 2147483648
        %v778 = vmul.f32 %v776, 1.442695
        %v779 = vpow.pop %v778
        %v780 = vmul.f32 %v777, 1.442695
        %v781 = vpow.pop %v780
        %v782 = vadd.f32 %v779, 1.0
        %v783 = vadd.f32 %v781, 1.0
        %v784 = vrcp.pop %v782
        %v785 = vmul.f32 1.0, %v784
        %v786 = vrcp.pop %v783
        %v787 = vmul.f32 1.0, %v786
        %v788 = vld [vmem:[#allocation11] sm:$0xf]
        %v789 = vld [vmem:[#allocation11 + $0x4] sm:$0xf]
        %v790 = vld [vmem:[#allocation11 + $0x8] sm:$0xf]
        %v791 = vld [vmem:[#allocation11 + $0xc] sm:$0xf]
        %v792 = vld [vmem:[#allocation11 + $0x10] sm:$0xf]
        %v793 = vld [vmem:[#allocation11 + $0x14] sm:$0xf]
        %v794 = vld [vmem:[#allocation11 + $0x18] sm:$0xf]
        %v795 = vld [vmem:[#allocation11 + $0x1c] sm:$0xf]
        %v796 = vld [vmem:[#allocation11 + $0x20] sm:$0xf]
        %v797 = vld [vmem:[#allocation11 + $0x24] sm:$0xf]
        %v798 = vld [vmem:[#allocation11 + $0x28] sm:$0xf]
        %v799 = vld [vmem:[#allocation11 + $0x2c] sm:$0xf]
        %v800 = vld [vmem:[#allocation11 + $0x30] sm:$0xf]
        %v801 = vld [vmem:[#allocation11 + $0x34] sm:$0xf]
        %v802 = vld [vmem:[#allocation11 + $0x38] sm:$0xf]
        %v803 = vld [vmem:[#allocation11 + $0x3c] sm:$0xf]
        %v805 = vlaneseq
        %v806 = vshrl.u32 %v805, 7
        %v807 = vsub.s32 0, %v806
        %v808 = vrot.slane %v435, %v807
        %v826 = vunpack.c.l.b16 %v788
        %v827 = vunpack.c.l.b16 %v789
        %v828 = vunpack.c.l.b16 %v790
        %v829 = vunpack.c.l.b16 %v791
        %v830 = vunpack.c.l.b16 %v792
        %v831 = vunpack.c.l.b16 %v793
        %v832 = vunpack.c.l.b16 %v794
        %v833 = vunpack.c.l.b16 %v795
        %v834 = vunpack.c.l.b16 %v796
        %v835 = vunpack.c.l.b16 %v797
        %v836 = vunpack.c.l.b16 %v798
        %v837 = vunpack.c.l.b16 %v799
        %v838 = vunpack.c.l.b16 %v800
        %v839 = vunpack.c.l.b16 %v801
        %v840 = vunpack.c.l.b16 %v802
        %v841 = vunpack.c.l.b16 %v803
        %v842 = vpack.c.b16 %v827, %v826
        %v843 = vpack.c.b16 %v829, %v828
        %v844 = vpack.c.b16 %v831, %v830
        %v845 = vpack.c.b16 %v833, %v832
        %v846 = vpack.c.b16 %v835, %v834
        %v847 = vpack.c.b16 %v837, %v836
        %v848 = vpack.c.b16 %v839, %v838
        %v849 = vpack.c.b16 %v841, %v840
        %858 = vmatprep.subr.bf16.mxu0 0
        %859 = vmatpush1.bf16.msra.mxu0 %v849
        %860 = vmatprep.subr.bf16.mxu0 0
        %861 = vmatpush1.bf16.msra.mxu0 %v848
        %862 = vmatprep.subr.bf16.mxu0 0
        %863 = vmatpush1.bf16.msra.mxu0 %v847
        %864 = vmatprep.subr.bf16.mxu0 0
        %865 = vmatpush1.bf16.msra.mxu0 %v846
        %866 = vmatprep.subr.bf16.mxu0 0
        %867 = vmatpush1.bf16.msra.mxu0 %v845
        %868 = vmatprep.subr.bf16.mxu0 0
        %869 = vmatpush1.bf16.msra.mxu0 %v844
        %870 = vmatprep.subr.bf16.mxu0 0
        %871 = vmatpush1.bf16.msra.mxu0 %v843
        %872 = vmatprep.subr.bf16.mxu0 0
        %873 = vmatpush1.bf16.msra.mxu0 %v842
        %874 = vmatprep.subr.bf16.mxu0 0
        %875 = vmatpush2.bf16.msra.mxu0 0
        %876 = vmatprep.subr.bf16.mxu0 0
        %877 = vmatpush2.bf16.msra.mxu0 0
        %878 = vmatprep.subr.bf16.mxu0 0
        %879 = vmatpush2.bf16.msra.mxu0 0
        %880 = vmatprep.subr.bf16.mxu0 0
        %881 = vmatpush2.bf16.msra.mxu0 0
        %882 = vmatprep.subr.bf16.mxu0 0
        %883 = vmatpush2.bf16.msra.mxu0 0
        %884 = vmatprep.subr.bf16.mxu0 0
        %885 = vmatpush2.bf16.msra.mxu0 0
        %886 = vmatprep.subr.bf16.mxu0 0
        %887 = vmatpush2.bf16.msra.mxu0 0
        %888 = vmatprep.subr.bf16.mxu0 0
        %889 = vmatpush2.bf16.msra.mxu0 0
        %890 = vmatprep.mubr.bf16.mxu0 0
        %891 = vmatmul.mubr.bf16.gmra.mxu0 %v530
        %v892 = vpop.f32.mrf.mxu0
        %v893 = vadd.f32 %v808, %v892
        %v894 = vpop.f32.mrf.mxu0
        %v895 = vpop.f32.mrf.mxu0
        %v896 = vpop.f32.mrf.mxu0
        %897 = vdwg.mxu0
        %v898 = vld [vmem:[#allocation12] sm:$0xf]
        %v899 = vld [vmem:[#allocation12 + $0x4] sm:$0xf]
        %v900 = vld [vmem:[#allocation12 + $0x8] sm:$0xf]
        %v901 = vld [vmem:[#allocation12 + $0xc] sm:$0xf]
        %v902 = vld [vmem:[#allocation12 + $0x10] sm:$0xf]
        %v903 = vld [vmem:[#allocation12 + $0x14] sm:$0xf]
        %v904 = vld [vmem:[#allocation12 + $0x18] sm:$0xf]
        %v905 = vld [vmem:[#allocation12 + $0x1c] sm:$0xf]
        %v906 = vld [vmem:[#allocation12 + $0x20] sm:$0xf]
        %v907 = vld [vmem:[#allocation12 + $0x24] sm:$0xf]
        %v908 = vld [vmem:[#allocation12 + $0x28] sm:$0xf]
        %v909 = vld [vmem:[#allocation12 + $0x2c] sm:$0xf]
        %v910 = vld [vmem:[#allocation12 + $0x30] sm:$0xf]
        %v911 = vld [vmem:[#allocation12 + $0x34] sm:$0xf]
        %v912 = vld [vmem:[#allocation12 + $0x38] sm:$0xf]
        %v913 = vld [vmem:[#allocation12 + $0x3c] sm:$0xf]
        %v915 = vlaneseq
        %v916 = vshrl.u32 %v915, 7
        %v917 = vsub.s32 0, %v916
        %v918 = vrot.slane %v436, %v917
        %v936 = vunpack.c.l.b16 %v898
        %v937 = vunpack.c.l.b16 %v899
        %v938 = vunpack.c.l.b16 %v900
        %v939 = vunpack.c.l.b16 %v901
        %v940 = vunpack.c.l.b16 %v902
        %v941 = vunpack.c.l.b16 %v903
        %v942 = vunpack.c.l.b16 %v904
        %v943 = vunpack.c.l.b16 %v905
        %v944 = vunpack.c.l.b16 %v906
        %v945 = vunpack.c.l.b16 %v907
        %v946 = vunpack.c.l.b16 %v908
        %v947 = vunpack.c.l.b16 %v909
        %v948 = vunpack.c.l.b16 %v910
        %v949 = vunpack.c.l.b16 %v911
        %v950 = vunpack.c.l.b16 %v912
        %v951 = vunpack.c.l.b16 %v913
        %v952 = vpack.c.b16 %v937, %v936
        %v953 = vpack.c.b16 %v939, %v938
        %v954 = vpack.c.b16 %v941, %v940
        %v955 = vpack.c.b16 %v943, %v942
        %v956 = vpack.c.b16 %v945, %v944
        %v957 = vpack.c.b16 %v947, %v946
        %v958 = vpack.c.b16 %v949, %v948
        %v959 = vpack.c.b16 %v951, %v950
        %968 = vmatprep.subr.bf16.mxu0 0
        %969 = vmatpush1.bf16.msra.mxu0 %v959
        %970 = vmatprep.subr.bf16.mxu0 0
        %971 = vmatpush1.bf16.msra.mxu0 %v958
        %972 = vmatprep.subr.bf16.mxu0 0
        %973 = vmatpush1.bf16.msra.mxu0 %v957
        %974 = vmatprep.subr.bf16.mxu0 0
        %975 = vmatpush1.bf16.msra.mxu0 %v956
        %976 = vmatprep.subr.bf16.mxu0 0
        %977 = vmatpush1.bf16.msra.mxu0 %v955
        %978 = vmatprep.subr.bf16.mxu0 0
        %979 = vmatpush1.bf16.msra.mxu0 %v954
        %980 = vmatprep.subr.bf16.mxu0 0
        %981 = vmatpush1.bf16.msra.mxu0 %v953
        %982 = vmatprep.subr.bf16.mxu0 0
        %983 = vmatpush1.bf16.msra.mxu0 %v952
        %984 = vmatprep.subr.bf16.mxu0 0
        %985 = vmatpush2.bf16.msra.mxu0 0
        %986 = vmatprep.subr.bf16.mxu0 0
        %987 = vmatpush2.bf16.msra.mxu0 0
        %988 = vmatprep.subr.bf16.mxu0 0
        %989 = vmatpush2.bf16.msra.mxu0 0
        %990 = vmatprep.subr.bf16.mxu0 0
        %991 = vmatpush2.bf16.msra.mxu0 0
        %992 = vmatprep.subr.bf16.mxu0 0
        %993 = vmatpush2.bf16.msra.mxu0 0
        %994 = vmatprep.subr.bf16.mxu0 0
        %995 = vmatpush2.bf16.msra.mxu0 0
        %996 = vmatprep.subr.bf16.mxu0 0
        %997 = vmatpush2.bf16.msra.mxu0 0
        %998 = vmatprep.subr.bf16.mxu0 0
        %999 = vmatpush2.bf16.msra.mxu0 0
        %1000 = vmatprep.mubr.bf16.mxu0 0
        %1001 = vmatmul.mubr.bf16.gmra.mxu0 %v531
        %v1002 = vpop.f32.mrf.mxu0
        %v1003 = vadd.f32 %v918, %v1002
        %v1004 = vpop.f32.mrf.mxu0
        %v1005 = vpop.f32.mrf.mxu0
        %v1006 = vpop.f32.mrf.mxu0
        %1007 = vdwg.mxu0
        %v1008 = vmul.f32 %v785, %v1003
        %v1009 = vadd.f32 %v893, %v1008
        %v1010 = vtanh.pop %v1009
        %v1011 = vsub.f32 1.0, %v787
        %v1012 = vmul.f32 %v1011, %v1010
        %v1013 = vmul.f32 %v787, %v444
        %v1014 = vadd.f32 %v1012, %v1013
        %v1015 = vpack.c.bf16 %v1014, %v1014
        %v1016 = vld [vmem:[#allocation14] sm:$0xf]
        %v1017 = vld [vmem:[#allocation14 + $0x4] sm:$0xf]
        %v1018 = vld [vmem:[#allocation14 + $0x8] sm:$0xf]
        %v1019 = vld [vmem:[#allocation14 + $0xc] sm:$0xf]
        %v1020 = vld [vmem:[#allocation14 + $0x10] sm:$0xf]
        %v1021 = vld [vmem:[#allocation14 + $0x14] sm:$0xf]
        %v1022 = vld [vmem:[#allocation14 + $0x18] sm:$0xf]
        %v1023 = vld [vmem:[#allocation14 + $0x1c] sm:$0xf]
        %v1024 = vld [vmem:[#allocation14 + $0x20] sm:$0xf]
        %v1025 = vld [vmem:[#allocation14 + $0x24] sm:$0xf]
        %v1026 = vld [vmem:[#allocation14 + $0x28] sm:$0xf]
        %v1027 = vld [vmem:[#allocation14 + $0x2c] sm:$0xf]
        %v1028 = vld [vmem:[#allocation14 + $0x30] sm:$0xf]
        %v1029 = vld [vmem:[#allocation14 + $0x34] sm:$0xf]
        %v1030 = vld [vmem:[#allocation14 + $0x38] sm:$0xf]
        %v1031 = vld [vmem:[#allocation14 + $0x3c] sm:$0xf]
        %v1033 = vlaneseq
        %v1034 = vshrl.u32 %v1033, 7
        %v1035 = vsub.s32 0, %v1034
        %v1036 = vrot.slane %v437, %v1035
        %v1054 = vunpack.c.l.b16 %v1016
        %v1055 = vunpack.c.l.b16 %v1017
        %v1056 = vunpack.c.l.b16 %v1018
        %v1057 = vunpack.c.l.b16 %v1019
        %v1058 = vunpack.c.l.b16 %v1020
        %v1059 = vunpack.c.l.b16 %v1021
        %v1060 = vunpack.c.l.b16 %v1022
        %v1061 = vunpack.c.l.b16 %v1023
        %v1062 = vunpack.c.l.b16 %v1024
        %v1063 = vunpack.c.l.b16 %v1025
        %v1064 = vunpack.c.l.b16 %v1026
        %v1065 = vunpack.c.l.b16 %v1027
        %v1066 = vunpack.c.l.b16 %v1028
        %v1067 = vunpack.c.l.b16 %v1029
        %v1068 = vunpack.c.l.b16 %v1030
        %v1069 = vunpack.c.l.b16 %v1031
        %v1070 = vpack.c.b16 %v1055, %v1054
        %v1071 = vpack.c.b16 %v1057, %v1056
        %v1072 = vpack.c.b16 %v1059, %v1058
        %v1073 = vpack.c.b16 %v1061, %v1060
        %v1074 = vpack.c.b16 %v1063, %v1062
        %v1075 = vpack.c.b16 %v1065, %v1064
        %v1076 = vpack.c.b16 %v1067, %v1066
        %v1077 = vpack.c.b16 %v1069, %v1068
        %1086 = vmatprep.subr.bf16.mxu0 0
        %1087 = vmatpush1.bf16.msra.mxu0 %v1077
        %1088 = vmatprep.subr.bf16.mxu0 0
        %1089 = vmatpush1.bf16.msra.mxu0 %v1076
        %1090 = vmatprep.subr.bf16.mxu0 0
        %1091 = vmatpush1.bf16.msra.mxu0 %v1075
        %1092 = vmatprep.subr.bf16.mxu0 0
        %1093 = vmatpush1.bf16.msra.mxu0 %v1074
        %1094 = vmatprep.subr.bf16.mxu0 0
        %1095 = vmatpush1.bf16.msra.mxu0 %v1073
        %1096 = vmatprep.subr.bf16.mxu0 0
        %1097 = vmatpush1.bf16.msra.mxu0 %v1072
        %1098 = vmatprep.subr.bf16.mxu0 0
        %1099 = vmatpush1.bf16.msra.mxu0 %v1071
        %1100 = vmatprep.subr.bf16.mxu0 0
        %1101 = vmatpush1.bf16.msra.mxu0 %v1070
        %1102 = vmatprep.subr.bf16.mxu0 0
        %1103 = vmatpush2.bf16.msra.mxu0 0
        %1104 = vmatprep.subr.bf16.mxu0 0
        %1105 = vmatpush2.bf16.msra.mxu0 0
        %1106 = vmatprep.subr.bf16.mxu0 0
        %1107 = vmatpush2.bf16.msra.mxu0 0
        %1108 = vmatprep.subr.bf16.mxu0 0
        %1109 = vmatpush2.bf16.msra.mxu0 0
        %1110 = vmatprep.subr.bf16.mxu0 0
        %1111 = vmatpush2.bf16.msra.mxu0 0
        %1112 = vmatprep.subr.bf16.mxu0 0
        %1113 = vmatpush2.bf16.msra.mxu0 0
        %1114 = vmatprep.subr.bf16.mxu0 0
        %1115 = vmatpush2.bf16.msra.mxu0 0
        %1116 = vmatprep.subr.bf16.mxu0 0
        %1117 = vmatpush2.bf16.msra.mxu0 0
        %1118 = vmatprep.mubr.bf16.mxu0 0
        %1119 = vmatmul.mubr.bf16.gmra.mxu0 %v1015
        %v1120 = vpop.f32.mrf.mxu0
        %v1121 = vadd.f32 %v1036, %v1120
        %v1122 = vpop.f32.mrf.mxu0
        %v1123 = vpop.f32.mrf.mxu0
        %v1124 = vpop.f32.mrf.mxu0
        %1125 = vdwg.mxu0
        %1126 = vst [vmem:[#allocation2] sm:$0xff] %v1014
        %1127 = vst [vmem:[%s429] sm:$0xff] %v1121
        %p1128 = scmp.eq.s32.totalorder %s31, 7
        // Predicated region
        $region85: #{tpu_custom_call.1} parent=51 // pred_check
          %p1129 = pneg %p1128
        $region86: #{tpu_custom_call.1} parent=51 // pred_check_branch
          %1131 = sbr.rel (%p1129) target = $region88
        $region87: #{tpu_custom_call.1} parent=51 // pred_region
          %1132 = vst [vmem:[#allocation16] sm:$0xff] %v1014
        $region88: #{tpu_custom_call.1} parent=51 // pred_fallthru
          _
        %s1133 = sand.u32 %s212, 1
        %s1134 = scalar_lea.sflag [#allocation5], %s1133
        %s1135 = sand.u32 %s212, 1
        %s1136 = smul.addr %s1135, 8
        %s1137 = scalar_lea.vmem [#allocation15], %s1136
        // Predicated region
        $region89: #{tpu_custom_call.1} parent=51 // pred_check
          %p1138 = pneg %p222
        $region90: #{tpu_custom_call.1} parent=51 // pred_check_branch
          %1140 = sbr.rel (%p1138) target = $region92
        $region91: #{tpu_custom_call.1} parent=51 // pred_region
          %s1142 = ssub.s32 128, 128
          %1143 = vsyncadd %s1134, %s1142
          %s1144 = smul.addr %s31, 128
          %s1145 = scalar_lea.hbm %s8, %s1144
          %s1147 = sshll.u32 %s1137, 4
          %s1148 = int_to_ptr.vmem [resolvable:$true] %s1147
          %1150 = dma.vmem_to_hbm [thread:$0]  %s1148, 128, %s1145, %s1134
        $region92: #{tpu_custom_call.1} parent=51 // pred_fallthru
          _
        // Predicated region
        $region93: #{tpu_custom_call.1} parent=51 // pred_check
          %p1151 = pneg %p243
        $region94: #{tpu_custom_call.1} parent=51 // pred_check_branch
          %1153 = sbr.rel (%p1151) target = $region96
        $region95: #{tpu_custom_call.1} parent=51 // pred_region
          %s1155 = ssub.s32 128, 128
          %1156 = vsyncadd [#allocation17], %s1155
          %s1158 = sshll.u32 [#allocation16], 4
          %s1159 = int_to_ptr.vmem [resolvable:$true] %s1158
          %1161 = dma.vmem_to_hbm [thread:$0]  %s1159, 128, %s9, [#allocation17]
        $region96: #{tpu_custom_call.1} parent=51 // pred_fallthru
          _
        // Predicated region
        $region97: #{tpu_custom_call.1} parent=51 // pred_check
          %p1162 = pneg %p243
        $region98: #{tpu_custom_call.1} parent=51 // pred_check_branch
          %1164 = sbr.rel (%p1162) target = $region100
        $region99: #{tpu_custom_call.1} parent=51 // pred_region
          %1165 = dma.done [#allocation17], 128
        $region100: #{tpu_custom_call.1} parent=51 // pred_fallthru
          _
      $region52: #{tpu_custom_call.1} parent=5 // pred_fallthru
        _
      %p1166 = scmp.le.s32.totalorder 2, %s26
      // Predicated region
      $region101: #{tpu_custom_call.1} parent=5 // pred_check
        %p1167 = pneg %p1166
      $region102: #{tpu_custom_call.1} parent=5 // pred_check_branch
        %1169 = sbr.rel (%p1167) target = $region104
      $region103: #{tpu_custom_call.1} parent=5 // pred_region
        %s1170 = ssub.s32 %s26, 2
        // Predicated region
        $region105: #{tpu_custom_call.1} parent=103 // pred_check
          %p1171 = pneg %p228
        $region106: #{tpu_custom_call.1} parent=103 // pred_check_branch
          %1173 = sbr.rel (%p1171) target = $region108
        $region107: #{tpu_custom_call.1} parent=103 // pred_region
          %s1174 = sand.u32 %s213, 1
          %s1175 = scalar_lea.sflag [#allocation5], %s1174
          %s1176 = sand.u32 %s213, 1
          %s1177 = smul.addr %s1176, 8
          %s1178 = scalar_lea.vmem [#allocation15], %s1177
          %1179 = dma.done %s1175, 128
        $region108: #{tpu_custom_call.1} parent=103 // pred_fallthru
          _
      $region104: #{tpu_custom_call.1} parent=5 // pred_fallthru
        _
    $region6: #{tpu_custom_call.1} parent=1 // loop_footer
      %s30 = sadd.s32 1, %s26
    $region7: #{tpu_custom_call.1} parent=1 // loop_footer_branch
      %25 = sbr.rel target = $region3
    $region8: #{tpu_custom_call.1} parent=1 // loop_exit
      _
    %1180 = vsyncpa [#allocation4], 1
    %s1181 = scalar_lea.sflag [#allocation4], 1
    %1182 = vsyncpa %s1181, 1
    %1183 = vsyncpa [#allocation7], 1
    %1184 = vsyncpa [#allocation10], 1
    %1185 = vsyncpa [#allocation13], 1
    %1186 = vsyncpa [#allocation5], 1
    %s1187 = scalar_lea.sflag [#allocation5], 1
    %1188 = vsyncpa %s1187, 1
    %1189 = vsyncpa [#allocation17], 1

</llo_original>
